<compile_context>
chip_gen: v7x
topology: tpu7x:2x2x1
jax: 0.10.0
libtpu: 0.0.40
codegen_flags: <defaults>
</compile_context>

<pallas_src>
import functools

import jax
import jax.numpy as jnp
from jax.experimental import pallas as pl
from jax.experimental.pallas import tpu as pltpu


def _rup(x, m):
    return (x + m - 1) // m * m


def _autoencoder_kernel(x_ref, w1_ref, w2_ref, w3_ref, w4_ref, w5_ref, w6_ref,
                        b_ref, enc_ref, dec_ref):
    """Full encoder+decoder forward for one [block_b, DIN] batch tile, entirely in VMEM.

    x_ref:    [block_b, DIN]  bf16   zero-padded input activations
    w{i}_ref: [Din_i, Dout_i] bf16   per-layer zero-padded weights, layout [in, out]
    b_ref:    [8, BMAX]       f32    rows 0..5 hold the zero-padded biases
    enc_ref:  [block_b, E]    f32    encoded (valid lanes [0:encoding_dim], rest 0)
    dec_ref:  [block_b, DIN]  f32    decoded (valid lanes [0:input_dim],   rest 0)
    """
    w_refs = (w1_ref, w2_ref, w3_ref, w4_ref, w5_ref, w6_ref)

    h = x_ref[...]                       # bf16 MXU operand
    for i, w_ref in enumerate(w_refs):
        width = w_ref.shape[1]           # static, multiple of 128
        y = jnp.dot(h, w_ref[...], preferred_element_type=jnp.float32)
        y = y + b_ref[i:i + 1, :width]   # f32 bias add (lane-aligned static slice)
        if i == 2:                       # encoder bottleneck: no activation
            enc_ref[...] = y             # full-width, unmasked store
        elif i == 5:                     # decoder output: no activation
            dec_ref[...] = y
        else:
            y = jnp.maximum(y, 0.0)      # ReLU on the f32 VPU path (safe on v5e)
        h = y.astype(jnp.bfloat16)       # bf16 operand for the next matmul


@functools.partial(jax.jit, static_argnames=("block_b",))
def autoencoder_forward(x, params, block_b=512):
    """Autoencoder forward pass.

    x:      [B, input_dim] float array
    params: dict with w1..w6 stored as [in, out] and b1..b6 as [1, out]
    returns (encoded [B, encoding_dim] f32, decoded [B, input_dim] f32)
    """
    B, input_dim = x.shape
    encoding_dim = params["w3"].shape[1]

    # Per-layer lane-dense padded widths (each a multiple of 128).
    DIN = _rup(input_dim, 128)
    E = _rup(encoding_dim, 128)
    H1 = _rup(128, 128)   # 128
    H2 = _rup(64, 128)    # 128
    BMAX = max(DIN, E, H1, H2)

    # (fan_in, fan_out, padded_in, padded_out) per layer, PyTorch layer order.
    layer_dims = [
        (input_dim, 128, DIN, H1),
        (128, 64, H1, H2),
        (64, encoding_dim, H2, E),
        (encoding_dim, 64, E, H2),
        (64, 128, H2, H1),
        (128, input_dim, H1, DIN),
    ]

    # Batch tile: large (default 512) to amortize per-grid-step overhead; 16-row
    # aligned for bf16 sublane packing; a batch smaller than the tile becomes one tile.
    block_b = max(16, (int(block_b) // 16) * 16)
    if B <= block_b:
        block_b = _rup(B, 16)
    B_pad = _rup(B, block_b)
    grid = (B_pad // block_b,)

    # ---- pack & zero-pad operands (zero padding keeps the math exact) ----
    xp = jnp.zeros((B_pad, DIN), jnp.bfloat16)
    xp = xp.at[:B, :input_dim].set(x.astype(jnp.bfloat16))

    w_padded = []
    b_packed = jnp.zeros((8, BMAX), jnp.float32)   # 8 rows for clean (8,128) tiling
    for idx, (fi, fo, pi, po) in enumerate(layer_dims):
        w = params[f"w{idx + 1}"]
        bias = params[f"b{idx + 1}"].reshape(-1)
        wp = jnp.zeros((pi, po), jnp.bfloat16)
        wp = wp.at[:fi, :fo].set(w.astype(jnp.bfloat16))
        w_padded.append(wp)
        b_packed = b_packed.at[idx, :fo].set(bias.astype(jnp.float32))

    in_specs = [pl.BlockSpec((block_b, DIN), lambda i: (i, 0))]          # x marches over batch
    for wp in w_padded:                                                  # weights resident
        in_specs.append(pl.BlockSpec(wp.shape, lambda i: (0, 0)))
    in_specs.append(pl.BlockSpec((8, BMAX), lambda i: (0, 0)))           # biases resident

    out_shape = (
        jax.ShapeDtypeStruct((B_pad, E), jnp.float32),     # encoded (padded)
        jax.ShapeDtypeStruct((B_pad, DIN), jnp.float32),   # decoded (padded)
    )
    out_specs = [
        pl.BlockSpec((block_b, E), lambda i: (i, 0)),
        pl.BlockSpec((block_b, DIN), lambda i: (i, 0)),
    ]

    enc_pad, dec_pad = pl.pallas_call(
        _autoencoder_kernel,
        out_shape=out_shape,
        grid_spec=pltpu.PrefetchScalarGridSpec(
            num_scalar_prefetch=0,
            grid=grid,
            in_specs=in_specs,
            out_specs=out_specs,
        ),
        compiler_params=pltpu.CompilerParams(
            dimension_semantics=("parallel",),      # batch tiles shard across TCs on v7x
            vmem_limit_bytes=48 * 1024 * 1024,      # safe on v5e/v6e/v7x; usage ~2 MiB here
        ),
    )(xp, *w_padded, b_packed)

    return enc_pad[:B, :encoding_dim], dec_pad[:B, :input_dim]


def init_params(key, input_dim, encoding_dim):
    """Deterministic init mimicking PyTorch nn.Linear default (uniform +/- 1/sqrt(fan_in)).

    Weights stored as [in, out] (already transposed for x @ W)."""
    dims = [(input_dim, 128), (128, 64), (64, encoding_dim),
            (encoding_dim, 64), (64, 128), (128, input_dim)]
    params = {}
    for idx, (fan_in, fan_out) in enumerate(dims, start=1):
        key, kw, kb = jax.random.split(key, 3)
        bound = 1.0 / jnp.sqrt(fan_in)
        params[f"w{idx}"] = jax.random.uniform(
            kw, (fan_in, fan_out), jnp.float32, -bound, bound)
        params[f"b{idx}"] = jax.random.uniform(
            kb, (1, fan_out), jnp.float32, -bound, bound)
    return params


def reference_forward_f32(x, params):
    """Plain-JAX full-f32 reference (exact PyTorch semantics)."""
    h = jnp.maximum(x @ params["w1"] + params["b1"], 0.0)
    h = jnp.maximum(h @ params["w2"] + params["b2"], 0.0)
    enc = h @ params["w3"] + params["b3"]
    h = jnp.maximum(enc @ params["w4"] + params["b4"], 0.0)
    h = jnp.maximum(h @ params["w5"] + params["b5"], 0.0)
    dec = h @ params["w6"] + params["b6"]
    return enc, dec


def reference_forward_mixed(x, params):
    """Plain-JAX reference using the kernel's bf16-operand / f32-accumulate scheme."""
    def lin(h, w, b):
        return jnp.dot(h.astype(jnp.bfloat16), w.astype(jnp.bfloat16),
                       preferred_element_type=jnp.float32) + b
    h = jnp.maximum(lin(x, params["w1"], params["b1"]), 0.0)
    h = jnp.maximum(lin(h, params["w2"], params["b2"]), 0.0)
    enc = lin(h, params["w3"], params["b3"])
    h = jnp.maximum(lin(enc, params["w4"], params["b4"]), 0.0)
    h = jnp.maximum(lin(h, params["w5"], params["b5"]), 0.0)
    dec = lin(h, params["w6"], params["b6"])
    return enc, dec


if __name__ == "__main__":
    input_dim = 32
    encoding_dim = 16
    batch = 50   # deliberately not a multiple of the tile: exercises batch padding path

    key = jax.random.PRNGKey(0)
    key, kx = jax.random.split(key)
    x = jax.random.normal(kx, (batch, input_dim), jnp.float32)
    params = init_params(key, input_dim, encoding_dim)

    enc, dec = autoencoder_forward(x, params)
    jax.block_until_ready((enc, dec))

    assert enc.shape == (batch, encoding_dim)
    assert dec.shape == (batch, input_dim)

    # Tight check vs. a reference that uses the same bf16/f32 mixed precision.
    enc_mx, dec_mx = reference_forward_mixed(x, params)
    assert jnp.allclose(enc, enc_mx, atol=2e-3, rtol=2e-3)
    assert jnp.allclose(dec, dec_mx, atol=2e-3, rtol=2e-3)

    # Loose sanity check vs. the full-f32 reference (bf16 operand rounding expected).
    enc_f32, dec_f32 = reference_forward_f32(x, params)
    assert jnp.allclose(enc, enc_f32, atol=1e-1, rtol=1e-1)
    assert jnp.allclose(dec, dec_f32, atol=1e-1, rtol=1e-1)

    print("KERNEL_OK")
</pallas_src>

<mosaic_0001>
module attributes {stable_mosaic.version = 11 : i64} {
  func.func @_autoencoder_kernel(%arg0: i32, %arg1: memref<64x128xbf16, #tpu.memory_space<vmem>>, %arg2: memref<128x128xbf16, #tpu.memory_space<vmem>>, %arg3: memref<128x128xbf16, #tpu.memory_space<vmem>>, %arg4: memref<128x128xbf16, #tpu.memory_space<vmem>>, %arg5: memref<128x128xbf16, #tpu.memory_space<vmem>>, %arg6: memref<128x128xbf16, #tpu.memory_space<vmem>>, %arg7: memref<128x128xbf16, #tpu.memory_space<vmem>>, %arg8: memref<8x128xf32, #tpu.memory_space<vmem>>, %arg9: memref<64x128xf32, #tpu.memory_space<vmem>>, %arg10: memref<64x128xf32, #tpu.memory_space<vmem>>) attributes {dimension_semantics = [#tpu.dimension_semantics<parallel>], iteration_bounds = array<i64: 1>, scalar_prefetch = 0 : i64, scratch_operands = 0 : i64, tpu.core_type = #tpu.core_type<tc>, window_params = [{transform_indices = @transform_0, window_bounds = array<i64: 64, 128>}, {pipeline_mode = #tpu.pipeline_mode<synchronous>, transform_indices = @transform_1, window_bounds = array<i64: 128, 128>}, {pipeline_mode = #tpu.pipeline_mode<synchronous>, transform_indices = @transform_2, window_bounds = array<i64: 128, 128>}, {pipeline_mode = #tpu.pipeline_mode<synchronous>, transform_indices = @transform_3, window_bounds = array<i64: 128, 128>}, {pipeline_mode = #tpu.pipeline_mode<synchronous>, transform_indices = @transform_4, window_bounds = array<i64: 128, 128>}, {pipeline_mode = #tpu.pipeline_mode<synchronous>, transform_indices = @transform_5, window_bounds = array<i64: 128, 128>}, {pipeline_mode = #tpu.pipeline_mode<synchronous>, transform_indices = @transform_6, window_bounds = array<i64: 128, 128>}, {pipeline_mode = #tpu.pipeline_mode<synchronous>, transform_indices = @transform_7, window_bounds = array<i64: 8, 128>}, {transform_indices = @transform_8, window_bounds = array<i64: 64, 128>}, {transform_indices = @transform_9, window_bounds = array<i64: 64, 128>}]} {
    %c0 = arith.constant 0 : index
    %c0_0 = arith.constant 0 : index
    %0 = vector.load %arg1[%c0, %c0_0] : memref<64x128xbf16, #tpu.memory_space<vmem>>, vector<64x128xbf16>
    %c0_1 = arith.constant 0 : index
    %c0_2 = arith.constant 0 : index
    %1 = vector.load %arg2[%c0_1, %c0_2] : memref<128x128xbf16, #tpu.memory_space<vmem>>, vector<128x128xbf16>
    %cst = arith.constant dense<0.000000e+00> : vector<64x128xf32>
    %2 = tpu.matmul %0, %1, %cst {dimension_numbers = #tpu.dot_dimension_numbers<[1], [0], [0], [1], [0, 0, 1, 1], [], []>} : vector<64x128xbf16>, vector<128x128xbf16>, vector<64x128xf32> -> vector<64x128xf32>
    %c0_3 = arith.constant 0 : index
    %c0_4 = arith.constant 0 : index
    %3 = vector.load %arg8[%c0_3, %c0_4] : memref<8x128xf32, #tpu.memory_space<vmem>>, vector<1x128xf32>
    %4 = vector.broadcast %3 : vector<1x128xf32> to vector<64x128xf32>
    %5 = arith.addf %2, %4 : vector<64x128xf32>
    %cst_5 = arith.constant 0.000000e+00 : f32
    %6 = vector.broadcast %cst_5 : f32 to vector<64x128xf32>
    %7 = arith.maximumf %5, %6 : vector<64x128xf32>
    %8 = arith.truncf %7 : vector<64x128xf32> to vector<64x128xbf16>
    %c0_6 = arith.constant 0 : index
    %c0_7 = arith.constant 0 : index
    %9 = vector.load %arg3[%c0_6, %c0_7] : memref<128x128xbf16, #tpu.memory_space<vmem>>, vector<128x128xbf16>
    %cst_8 = arith.constant dense<0.000000e+00> : vector<64x128xf32>
    %10 = tpu.matmul %8, %9, %cst_8 {dimension_numbers = #tpu.dot_dimension_numbers<[1], [0], [0], [1], [0, 0, 1, 1], [], []>} : vector<64x128xbf16>, vector<128x128xbf16>, vector<64x128xf32> -> vector<64x128xf32>
    %c1 = arith.constant 1 : index
    %c0_9 = arith.constant 0 : index
    %11 = vector.load %arg8[%c1, %c0_9] : memref<8x128xf32, #tpu.memory_space<vmem>>, vector<1x128xf32>
    %12 = vector.broadcast %11 : vector<1x128xf32> to vector<64x128xf32>
    %13 = arith.addf %10, %12 : vector<64x128xf32>
    %cst_10 = arith.constant 0.000000e+00 : f32
    %14 = vector.broadcast %cst_10 : f32 to vector<64x128xf32>
    %15 = arith.maximumf %13, %14 : vector<64x128xf32>
    %16 = arith.truncf %15 : vector<64x128xf32> to vector<64x128xbf16>
    %c0_11 = arith.constant 0 : index
    %c0_12 = arith.constant 0 : index
    %17 = vector.load %arg4[%c0_11, %c0_12] : memref<128x128xbf16, #tpu.memory_space<vmem>>, vector<128x128xbf16>
    %cst_13 = arith.constant dense<0.000000e+00> : vector<64x128xf32>
    %18 = tpu.matmul %16, %17, %cst_13 {dimension_numbers = #tpu.dot_dimension_numbers<[1], [0], [0], [1], [0, 0, 1, 1], [], []>} : vector<64x128xbf16>, vector<128x128xbf16>, vector<64x128xf32> -> vector<64x128xf32>
    %c2 = arith.constant 2 : index
    %c0_14 = arith.constant 0 : index
    %19 = vector.load %arg8[%c2, %c0_14] : memref<8x128xf32, #tpu.memory_space<vmem>>, vector<1x128xf32>
    %20 = vector.broadcast %19 : vector<1x128xf32> to vector<64x128xf32>
    %21 = arith.addf %18, %20 : vector<64x128xf32>
    %c0_15 = arith.constant 0 : index
    %c0_16 = arith.constant 0 : index
    %22 = vector.load %arg9[%c0_15, %c0_16] : memref<64x128xf32, #tpu.memory_space<vmem>>, vector<64x128xf32>
    tpu.vector_store %arg9[%c0_15, %c0_16], %21 {strides = array<i32>} : memref<64x128xf32, #tpu.memory_space<vmem>>, vector<64x128xf32>,
    %23 = arith.truncf %21 : vector<64x128xf32> to vector<64x128xbf16>
    %c0_17 = arith.constant 0 : index
    %c0_18 = arith.constant 0 : index
    %24 = vector.load %arg5[%c0_17, %c0_18] : memref<128x128xbf16, #tpu.memory_space<vmem>>, vector<128x128xbf16>
    %cst_19 = arith.constant dense<0.000000e+00> : vector<64x128xf32>
    %25 = tpu.matmul %23, %24, %cst_19 {dimension_numbers = #tpu.dot_dimension_numbers<[1], [0], [0], [1], [0, 0, 1, 1], [], []>} : vector<64x128xbf16>, vector<128x128xbf16>, vector<64x128xf32> -> vector<64x128xf32>
    %c3 = arith.constant 3 : index
    %c0_20 = arith.constant 0 : index
    %26 = vector.load %arg8[%c3, %c0_20] : memref<8x128xf32, #tpu.memory_space<vmem>>, vector<1x128xf32>
    %27 = vector.broadcast %26 : vector<1x128xf32> to vector<64x128xf32>
    %28 = arith.addf %25, %27 : vector<64x128xf32>
    %cst_21 = arith.constant 0.000000e+00 : f32
    %29 = vector.broadcast %cst_21 : f32 to vector<64x128xf32>
    %30 = arith.maximumf %28, %29 : vector<64x128xf32>
    %31 = arith.truncf %30 : vector<64x128xf32> to vector<64x128xbf16>
    %c0_22 = arith.constant 0 : index
    %c0_23 = arith.constant 0 : index
    %32 = vector.load %arg6[%c0_22, %c0_23] : memref<128x128xbf16, #tpu.memory_space<vmem>>, vector<128x128xbf16>
    %cst_24 = arith.constant dense<0.000000e+00> : vector<64x128xf32>
    %33 = tpu.matmul %31, %32, %cst_24 {dimension_numbers = #tpu.dot_dimension_numbers<[1], [0], [0], [1], [0, 0, 1, 1], [], []>} : vector<64x128xbf16>, vector<128x128xbf16>, vector<64x128xf32> -> vector<64x128xf32>
    %c4 = arith.constant 4 : index
    %c0_25 = arith.constant 0 : index
    %34 = vector.load %arg8[%c4, %c0_25] : memref<8x128xf32, #tpu.memory_space<vmem>>, vector<1x128xf32>
    %35 = vector.broadcast %34 : vector<1x128xf32> to vector<64x128xf32>
    %36 = arith.addf %33, %35 : vector<64x128xf32>
    %cst_26 = arith.constant 0.000000e+00 : f32
    %37 = vector.broadcast %cst_26 : f32 to vector<64x128xf32>
    %38 = arith.maximumf %36, %37 : vector<64x128xf32>
    %39 = arith.truncf %38 : vector<64x128xf32> to vector<64x128xbf16>
    %c0_27 = arith.constant 0 : index
    %c0_28 = arith.constant 0 : index
    %40 = vector.load %arg7[%c0_27, %c0_28] : memref<128x128xbf16, #tpu.memory_space<vmem>>, vector<128x128xbf16>
    %cst_29 = arith.constant dense<0.000000e+00> : vector<64x128xf32>
    %41 = tpu.matmul %39, %40, %cst_29 {dimension_numbers = #tpu.dot_dimension_numbers<[1], [0], [0], [1], [0, 0, 1, 1], [], []>} : vector<64x128xbf16>, vector<128x128xbf16>, vector<64x128xf32> -> vector<64x128xf32>
    %c5 = arith.constant 5 : index
    %c0_30 = arith.constant 0 : index
    %42 = vector.load %arg8[%c5, %c0_30] : memref<8x128xf32, #tpu.memory_space<vmem>>, vector<1x128xf32>
    %43 = vector.broadcast %42 : vector<1x128xf32> to vector<64x128xf32>
    %44 = arith.addf %41, %43 : vector<64x128xf32>
    %c0_31 = arith.constant 0 : index
    %c0_32 = arith.constant 0 : index
    %45 = vector.load %arg10[%c0_31, %c0_32] : memref<64x128xf32, #tpu.memory_space<vmem>>, vector<64x128xf32>
    tpu.vector_store %arg10[%c0_31, %c0_32], %44 {strides = array<i32>} : memref<64x128xf32, #tpu.memory_space<vmem>>, vector<64x128xf32>,
    return
  }
  func.func @transform_0(%arg0: i32) -> (i32, i32) {
    %c0_i32 = arith.constant 0 : i32
    %c0_i32_0 = arith.constant 0 : i32
    return %arg0, %c0_i32 : i32, i32
  }
  func.func @transform_1(%arg0: i32) -> (i32, i32) {
    %c0_i32 = arith.constant 0 : i32
    %c0_i32_0 = arith.constant 0 : i32
    %c0_i32_1 = arith.constant 0 : i32
    return %c0_i32, %c0_i32_0 : i32, i32
  }
  func.func @transform_2(%arg0: i32) -> (i32, i32) {
    %c0_i32 = arith.constant 0 : i32
    %c0_i32_0 = arith.constant 0 : i32
    %c0_i32_1 = arith.constant 0 : i32
    return %c0_i32, %c0_i32_0 : i32, i32
  }
  func.func @transform_3(%arg0: i32) -> (i32, i32) {
    %c0_i32 = arith.constant 0 : i32
    %c0_i32_0 = arith.constant 0 : i32
    %c0_i32_1 = arith.constant 0 : i32
    return %c0_i32, %c0_i32_0 : i32, i32
  }
  func.func @transform_4(%arg0: i32) -> (i32, i32) {
    %c0_i32 = arith.constant 0 : i32
    %c0_i32_0 = arith.constant 0 : i32
    %c0_i32_1 = arith.constant 0 : i32
    return %c0_i32, %c0_i32_0 : i32, i32
  }
  func.func @transform_5(%arg0: i32) -> (i32, i32) {
    %c0_i32 = arith.constant 0 : i32
    %c0_i32_0 = arith.constant 0 : i32
    %c0_i32_1 = arith.constant 0 : i32
    return %c0_i32, %c0_i32_0 : i32, i32
  }
  func.func @transform_6(%arg0: i32) -> (i32, i32) {
    %c0_i32 = arith.constant 0 : i32
    %c0_i32_0 = arith.constant 0 : i32
    %c0_i32_1 = arith.constant 0 : i32
    return %c0_i32, %c0_i32_0 : i32, i32
  }
  func.func @transform_7(%arg0: i32) -> (i32, i32) {
    %c0_i32 = arith.constant 0 : i32
    %c0_i32_0 = arith.constant 0 : i32
    %c0_i32_1 = arith.constant 0 : i32
    return %c0_i32, %c0_i32_0 : i32, i32
  }
  func.func @transform_8(%arg0: i32) -> (i32, i32) {
    %c0_i32 = arith.constant 0 : i32
    %c0_i32_0 = arith.constant 0 : i32
    return %arg0, %c0_i32 : i32, i32
  }
  func.func @transform_9(%arg0: i32) -> (i32, i32) {
    %c0_i32 = arith.constant 0 : i32
    %c0_i32_0 = arith.constant 0 : i32
    return %arg0, %c0_i32 : i32, i32
  }
}

</mosaic_0001>

<llo_original>
// kernel: autoencoder_forward.1
$region0: #{autoencoder_forward.1}
  #allocation0 [shape = 'u32[]', space=smem, size = 0x4, offset = 0x4, fixed_abs, tag = 'smem constant byte address 0x4 - core index']
  #allocation1 [shape = 'u32[144,128]{1,0:T(1,128)}', space=vmem, size = 0x12000, scoped, tag = 'internal scratch']
  %s0 = inlined_call_operand.vmem [shape: bf16[64,128], index: 0, kind: input, shape index: {}]
  %s1 = inlined_call_operand.vmem [shape: bf16[128,128], index: 1, kind: input, shape index: {}]
  %s2 = inlined_call_operand.vmem [shape: bf16[128,128], index: 2, kind: input, shape index: {}]
  %s3 = inlined_call_operand.vmem [shape: bf16[128,128], index: 3, kind: input, shape index: {}]
  %s4 = inlined_call_operand.vmem [shape: bf16[128,128], index: 4, kind: input, shape index: {}]
  %s5 = inlined_call_operand.vmem [shape: bf16[128,128], index: 5, kind: input, shape index: {}]
  %s6 = inlined_call_operand.vmem [shape: bf16[128,128], index: 6, kind: input, shape index: {}]
  %s7 = inlined_call_operand.vmem [shape: f32[8,128], index: 7, kind: input, shape index: {}]
  %s8 = inlined_call_operand.vmem [shape: f32[64,128], index: 8, kind: output, shape index: {0}]
  %s9 = inlined_call_operand.vmem [shape: f32[64,128], index: 9, kind: output, shape index: {1}]
  %10 = xla_tuple %s8, %s9
  %s11 = sld [smem:[#allocation0]]
  $region50: #{autoencoder_forward.1} parent=0
    _
  %s13 = ssub.s32 1, %s11
  %s14 = scalar_select 0, %s13, %s11
  // Predicated region
  $region2: #{autoencoder_forward.1} parent=0 // pred_check
    _
  $region3: #{autoencoder_forward.1} parent=0 // pred_check_branch
    %16 = sbr.rel (0) target = $region5
  $region4: #{autoencoder_forward.1} parent=0 // pred_region
    _
  $region5: #{autoencoder_forward.1} parent=0 // pred_fallthru
    _
  // Predicated region
  $region6: #{autoencoder_forward.1} parent=0 // pred_check
    _
  $region7: #{autoencoder_forward.1} parent=0 // pred_check_branch
    %18 = sbr.rel (0) target = $region9
  $region8: #{autoencoder_forward.1} parent=0 // pred_region
    _
  $region9: #{autoencoder_forward.1} parent=0 // pred_fallthru
    _
  // Predicated region
  $region10: #{autoencoder_forward.1} parent=0 // pred_check
    _
  $region11: #{autoencoder_forward.1} parent=0 // pred_check_branch
    %20 = sbr.rel (0) target = $region13
  $region12: #{autoencoder_forward.1} parent=0 // pred_region
    _
  $region13: #{autoencoder_forward.1} parent=0 // pred_fallthru
    _
  // Predicated region
  $region14: #{autoencoder_forward.1} parent=0 // pred_check
    _
  $region15: #{autoencoder_forward.1} parent=0 // pred_check_branch
    %22 = sbr.rel (0) target = $region17
  $region16: #{autoencoder_forward.1} parent=0 // pred_region
    _
  $region17: #{autoencoder_forward.1} parent=0 // pred_fallthru
    _
  // Predicated region
  $region18: #{autoencoder_forward.1} parent=0 // pred_check
    _
  $region19: #{autoencoder_forward.1} parent=0 // pred_check_branch
    %24 = sbr.rel (0) target = $region21
  $region20: #{autoencoder_forward.1} parent=0 // pred_region
    _
  $region21: #{autoencoder_forward.1} parent=0 // pred_fallthru
    _
  // Predicated region
  $region22: #{autoencoder_forward.1} parent=0 // pred_check
    _
  $region23: #{autoencoder_forward.1} parent=0 // pred_check_branch
    %26 = sbr.rel (0) target = $region25
  $region24: #{autoencoder_forward.1} parent=0 // pred_region
    _
  $region25: #{autoencoder_forward.1} parent=0 // pred_fallthru
    _
  // Predicated region
  $region26: #{autoencoder_forward.1} parent=0 // pred_check
    _
  $region27: #{autoencoder_forward.1} parent=0 // pred_check_branch
    %28 = sbr.rel (0) target = $region29
  $region28: #{autoencoder_forward.1} parent=0 // pred_region
    _
  $region29: #{autoencoder_forward.1} parent=0 // pred_fallthru
    _
  // Predicated region
  $region30: #{autoencoder_forward.1} parent=0 // pred_check
    _
  $region31: #{autoencoder_forward.1} parent=0 // pred_check_branch
    %30 = sbr.rel (0) target = $region33
  $region32: #{autoencoder_forward.1} parent=0 // pred_region
    _
  $region33: #{autoencoder_forward.1} parent=0 // pred_fallthru
    _
  %v32 = vld [vmem:[%s0] sm:$0xf]
  %v33 = vld [vmem:[%s0 + $0x4] sm:$0xf]
  %v34 = vld [vmem:[%s0 + $0x8] sm:$0xf]
  %v35 = vld [vmem:[%s0 + $0xc] sm:$0xf]
  %v36 = vld [vmem:[%s0 + $0x10] sm:$0xf]
  %v37 = vld [vmem:[%s0 + $0x14] sm:$0xf]
  %v38 = vld [vmem:[%s0 + $0x18] sm:$0xf]
  %v39 = vld [vmem:[%s0 + $0x1c] sm:$0xf]
  %v40 = vld [vmem:[%s1] sm:$0xf]
  %v41 = vld [vmem:[%s1 + $0x4] sm:$0xf]
  %v42 = vld [vmem:[%s1 + $0x8] sm:$0xf]
  %v43 = vld [vmem:[%s1 + $0xc] sm:$0xf]
  %v44 = vld [vmem:[%s1 + $0x10] sm:$0xf]
  %v45 = vld [vmem:[%s1 + $0x14] sm:$0xf]
  %v46 = vld [vmem:[%s1 + $0x18] sm:$0xf]
  %v47 = vld [vmem:[%s1 + $0x1c] sm:$0xf]
  %v48 = vld [vmem:[%s1 + $0x20] sm:$0xf]
  %v49 = vld [vmem:[%s1 + $0x24] sm:$0xf]
  %v50 = vld [vmem:[%s1 + $0x28] sm:$0xf]
  %v51 = vld [vmem:[%s1 + $0x2c] sm:$0xf]
  %v52 = vld [vmem:[%s1 + $0x30] sm:$0xf]
  %v53 = vld [vmem:[%s1 + $0x34] sm:$0xf]
  %v54 = vld [vmem:[%s1 + $0x38] sm:$0xf]
  %v55 = vld [vmem:[%s1 + $0x3c] sm:$0xf]
  %v56 = vld [vmem:[%s7] sm:$0x1]
  %v57 = vlaneseq
  %v58 = vshrl.u32 %v57, 7
  %v59 = vsub.s32 0, %v58
  %v60 = vrot.slane %v56, %v59
  %v69 = vunpack.c.l.b16 %v32
  %v70 = vunpack.c.l.b16 %v33
  %v71 = vunpack.c.l.b16 %v34
  %v72 = vunpack.c.l.b16 %v35
  %v73 = vunpack.c.l.b16 %v36
  %v74 = vunpack.c.l.b16 %v37
  %v75 = vunpack.c.l.b16 %v38
  %v76 = vunpack.c.l.b16 %v39
  %v77 = vpack.c.b16 %v70, %v69
  %v78 = vpack.c.b16 %v72, %v71
  %v79 = vpack.c.b16 %v74, %v73
  %v80 = vpack.c.b16 %v76, %v75
  %v101 = vunpack.c.l.b16 %v40
  %v102 = vunpack.c.l.b16 %v41
  %v103 = vunpack.c.l.b16 %v42
  %v104 = vunpack.c.l.b16 %v43
  %v105 = vunpack.c.l.b16 %v44
  %v106 = vunpack.c.l.b16 %v45
  %v107 = vunpack.c.l.b16 %v46
  %v108 = vunpack.c.l.b16 %v47
  %v109 = vunpack.c.l.b16 %v48
  %v110 = vunpack.c.l.b16 %v49
  %v111 = vunpack.c.l.b16 %v50
  %v112 = vunpack.c.l.b16 %v51
  %v113 = vunpack.c.l.b16 %v52
  %v114 = vunpack.c.l.b16 %v53
  %v115 = vunpack.c.l.b16 %v54
  %v116 = vunpack.c.l.b16 %v55
  %v117 = vpack.c.b16 %v102, %v101
  %v118 = vpack.c.b16 %v104, %v103
  %v119 = vpack.c.b16 %v106, %v105
  %v120 = vpack.c.b16 %v108, %v107
  %v121 = vpack.c.b16 %v110, %v109
  %v122 = vpack.c.b16 %v112, %v111
  %v123 = vpack.c.b16 %v114, %v113
  %v124 = vpack.c.b16 %v116, %v115
  %133 = vmatprep.subr.bf16.mxu0 0
  %134 = vmatpush1.bf16.msra.mxu0 %v117
  %135 = vmatprep.subr.bf16.mxu0 0
  %136 = vmatpush1.bf16.msra.mxu0 %v118
  %137 = vmatprep.subr.bf16.mxu0 0
  %138 = vmatpush1.bf16.msra.mxu0 %v119
  %139 = vmatprep.subr.bf16.mxu0 0
  %140 = vmatpush1.bf16.msra.mxu0 %v120
  %141 = vmatprep.subr.bf16.mxu0 0
  %142 = vmatpush1.bf16.msra.mxu0 %v121
  %143 = vmatprep.subr.bf16.mxu0 0
  %144 = vmatpush1.bf16.msra.mxu0 %v122
  %145 = vmatprep.subr.bf16.mxu0 0
  %146 = vmatpush1.bf16.msra.mxu0 %v123
  %147 = vmatprep.subr.bf16.mxu0 0
  %148 = vmatpush1.bf16.msra.mxu0 %v124
  %149 = vmatprep.subr.bf16.mxu0 0
  %150 = vmatpush1.bf16.msra.mxu0 0
  %151 = vmatprep.subr.bf16.mxu0 0
  %152 = vmatpush1.bf16.msra.mxu0 0
  %153 = vmatprep.subr.bf16.mxu0 0
  %154 = vmatpush1.bf16.msra.mxu0 0
  %155 = vmatprep.subr.bf16.mxu0 0
  %156 = vmatpush1.bf16.msra.mxu0 0
  %157 = vmatprep.subr.bf16.mxu0 0
  %158 = vmatpush1.bf16.msra.mxu0 0
  %159 = vmatprep.subr.bf16.mxu0 0
  %160 = vmatpush1.bf16.msra.mxu0 0
  %161 = vmatprep.subr.bf16.mxu0 0
  %162 = vmatpush1.bf16.msra.mxu0 0
  %163 = vmatprep.subr.bf16.mxu0 0
  %164 = vmatpush1.bf16.msra.mxu0 0
  %165 = vmatprep.mubr.bf16.mxu0 0
  %166 = vmatmul.mubr.bf16.gmra.mrb[0].mxu0 %v77
  %v167 = vpop.f32.mrb[0].mxu0
  %v168 = vadd.f32 %v60, %v167
  %v169 = vpop.f32.mrb[0].mxu0
  %v170 = vpop.f32.mrb[0].mxu0
  %v171 = vadd.f32 %v60, %v170
  %v172 = vpop.f32.mrb[0].mxu0
  %173 = vmatprep.mubr.bf16.mxu0 0
  %174 = vmatmul.mubr.bf16.gmra.mrb[0].mxu0 %v78
  %v175 = vpop.f32.mrb[0].mxu0
  %v176 = vadd.f32 %v60, %v175
  %v177 = vpop.f32.mrb[0].mxu0
  %v178 = vpop.f32.mrb[0].mxu0
  %v179 = vadd.f32 %v60, %v178
  %v180 = vpop.f32.mrb[0].mxu0
  %181 = vmatprep.mubr.bf16.mxu0 0
  %182 = vmatmul.mubr.bf16.gmra.mrb[0].mxu0 %v79
  %v183 = vpop.f32.mrb[0].mxu0
  %v184 = vadd.f32 %v60, %v183
  %v185 = vpop.f32.mrb[0].mxu0
  %v186 = vpop.f32.mrb[0].mxu0
  %v187 = vadd.f32 %v60, %v186
  %v188 = vpop.f32.mrb[0].mxu0
  %189 = vmatprep.mubr.bf16.mxu0 0
  %190 = vmatmul.mubr.bf16.gmra.mrb[0].mxu0 %v80
  %v191 = vpop.f32.mrb[0].mxu0
  %v192 = vadd.f32 %v60, %v191
  %v193 = vpop.f32.mrb[0].mxu0
  %v194 = vpop.f32.mrb[0].mxu0
  %v195 = vadd.f32 %v60, %v194
  %v196 = vpop.f32.mrb[0].mxu0
  %197 = vdwg.mxu0
  %v198 = vmax.f32 %v168, 0.0
  %v199 = vmax.f32 %v171, 0.0
  %v200 = vmax.f32 %v176, 0.0
  %v201 = vmax.f32 %v179, 0.0
  %v202 = vmax.f32 %v184, 0.0
  %v203 = vmax.f32 %v187, 0.0
  %v204 = vmax.f32 %v192, 0.0
  %v205 = vmax.f32 %v195, 0.0
  %v206 = vpack.c.bf16 %v199, %v198
  %v207 = vpack.c.bf16 %v201, %v200
  %v208 = vpack.c.bf16 %v203, %v202
  %v209 = vpack.c.bf16 %v205, %v204
  %v210 = vld [vmem:[%s2] sm:$0xf]
  %v211 = vld [vmem:[%s2 + $0x4] sm:$0xf]
  %v212 = vld [vmem:[%s2 + $0x8] sm:$0xf]
  %v213 = vld [vmem:[%s2 + $0xc] sm:$0xf]
  %v214 = vld [vmem:[%s2 + $0x10] sm:$0xf]
  %v215 = vld [vmem:[%s2 + $0x14] sm:$0xf]
  %v216 = vld [vmem:[%s2 + $0x18] sm:$0xf]
  %v217 = vld [vmem:[%s2 + $0x1c] sm:$0xf]
  %v218 = vld [vmem:[%s2 + $0x20] sm:$0xf]
  %v219 = vld [vmem:[%s2 + $0x24] sm:$0xf]
  %v220 = vld [vmem:[%s2 + $0x28] sm:$0xf]
  %v221 = vld [vmem:[%s2 + $0x2c] sm:$0xf]
  %v222 = vld [vmem:[%s2 + $0x30] sm:$0xf]
  %v223 = vld [vmem:[%s2 + $0x34] sm:$0xf]
  %v224 = vld [vmem:[%s2 + $0x38] sm:$0xf]
  %v225 = vld [vmem:[%s2 + $0x3c] sm:$0xf]
  %v226 = vld [vmem:[%s7 + $0x1] sm:$0x1]
  %v227 = vlaneseq
  %v228 = vshrl.u32 %v227, 7
  %v229 = vsub.s32 0, %v228
  %v230 = vrot.slane %v226, %v229
  %v247 = vunpack.c.l.b16 %v210
  %v248 = vunpack.c.l.b16 %v211
  %v249 = vunpack.c.l.b16 %v212
  %v250 = vunpack.c.l.b16 %v213
  %v251 = vunpack.c.l.b16 %v214
  %v252 = vunpack.c.l.b16 %v215
  %v253 = vunpack.c.l.b16 %v216
  %v254 = vunpack.c.l.b16 %v217
  %v255 = vunpack.c.l.b16 %v218
  %v256 = vunpack.c.l.b16 %v219
  %v257 = vunpack.c.l.b16 %v220
  %v258 = vunpack.c.l.b16 %v221
  %v259 = vunpack.c.l.b16 %v222
  %v260 = vunpack.c.l.b16 %v223
  %v261 = vunpack.c.l.b16 %v224
  %v262 = vunpack.c.l.b16 %v225
  %v263 = vpack.c.b16 %v248, %v247
  %v264 = vpack.c.b16 %v250, %v249
  %v265 = vpack.c.b16 %v252, %v251
  %v266 = vpack.c.b16 %v254, %v253
  %v267 = vpack.c.b16 %v256, %v255
  %v268 = vpack.c.b16 %v258, %v257
  %v269 = vpack.c.b16 %v260, %v259
  %v270 = vpack.c.b16 %v262, %v261
  %279 = vmatprep.subr.bf16.mxu0 0
  %280 = vmatpush1.bf16.msra.mxu0 %v263
  %281 = vmatprep.subr.bf16.mxu0 0
  %282 = vmatpush1.bf16.msra.mxu0 %v264
  %283 = vmatprep.subr.bf16.mxu0 0
  %284 = vmatpush1.bf16.msra.mxu0 %v265
  %285 = vmatprep.subr.bf16.mxu0 0
  %286 = vmatpush1.bf16.msra.mxu0 %v266
  %287 = vmatprep.subr.bf16.mxu0 0
  %288 = vmatpush1.bf16.msra.mxu0 %v267
  %289 = vmatprep.subr.bf16.mxu0 0
  %290 = vmatpush1.bf16.msra.mxu0 %v268
  %291 = vmatprep.subr.bf16.mxu0 0
  %292 = vmatpush1.bf16.msra.mxu0 %v269
  %293 = vmatprep.subr.bf16.mxu0 0
  %294 = vmatpush1.bf16.msra.mxu0 %v270
  %295 = vmatprep.subr.bf16.mxu0 0
  %296 = vmatpush1.bf16.msra.mxu0 0
  %297 = vmatprep.subr.bf16.mxu0 0
  %298 = vmatpush1.bf16.msra.mxu0 0
  %299 = vmatprep.subr.bf16.mxu0 0
  %300 = vmatpush1.bf16.msra.mxu0 0
  %301 = vmatprep.subr.bf16.mxu0 0
  %302 = vmatpush1.bf16.msra.mxu0 0
  %303 = vmatprep.subr.bf16.mxu0 0
  %304 = vmatpush1.bf16.msra.mxu0 0
  %305 = vmatprep.subr.bf16.mxu0 0
  %306 = vmatpush1.bf16.msra.mxu0 0
  %307 = vmatprep.subr.bf16.mxu0 0
  %308 = vmatpush1.bf16.msra.mxu0 0
  %309 = vmatprep.subr.bf16.mxu0 0
  %310 = vmatpush1.bf16.msra.mxu0 0
  %311 = vmatprep.mubr.bf16.mxu0 0
  %312 = vmatmul.mubr.bf16.gmra.mrb[0].mxu0 %v206
  %v313 = vpop.f32.mrb[0].mxu0
  %v314 = vadd.f32 %v230, %v313
  %v315 = vpop.f32.mrb[0].mxu0
  %v316 = vpop.f32.mrb[0].mxu0
  %v317 = vadd.f32 %v230, %v316
  %v318 = vpop.f32.mrb[0].mxu0
  %319 = vmatprep.mubr.bf16.mxu0 0
  %320 = vmatmul.mubr.bf16.gmra.mrb[0].mxu0 %v207
  %v321 = vpop.f32.mrb[0].mxu0
  %v322 = vadd.f32 %v230, %v321
  %v323 = vpop.f32.mrb[0].mxu0
  %v324 = vpop.f32.mrb[0].mxu0
  %v325 = vadd.f32 %v230, %v324
  %v326 = vpop.f32.mrb[0].mxu0
  %327 = vmatprep.mubr.bf16.mxu0 0
  %328 = vmatmul.mubr.bf16.gmra.mrb[0].mxu0 %v208
  %v329 = vpop.f32.mrb[0].mxu0
  %v330 = vadd.f32 %v230, %v329
  %v331 = vpop.f32.mrb[0].mxu0
  %v332 = vpop.f32.mrb[0].mxu0
  %v333 = vadd.f32 %v230, %v332
  %v334 = vpop.f32.mrb[0].mxu0
  %335 = vmatprep.mubr.bf16.mxu0 0
  %336 = vmatmul.mubr.bf16.gmra.mrb[0].mxu0 %v209
  %v337 = vpop.f32.mrb[0].mxu0
  %v338 = vadd.f32 %v230, %v337
  %v339 = vpop.f32.mrb[0].mxu0
  %v340 = vpop.f32.mrb[0].mxu0
  %v341 = vadd.f32 %v230, %v340
  %v342 = vpop.f32.mrb[0].mxu0
  %343 = vdwg.mxu0
  %v344 = vmax.f32 %v314, 0.0
  %v345 = vmax.f32 %v317, 0.0
  %v346 = vmax.f32 %v322, 0.0
  %v347 = vmax.f32 %v325, 0.0
  %v348 = vmax.f32 %v330, 0.0
  %v349 = vmax.f32 %v333, 0.0
  %v350 = vmax.f32 %v338, 0.0
  %v351 = vmax.f32 %v341, 0.0
  %v352 = vpack.c.bf16 %v345, %v344
  %v353 = vpack.c.bf16 %v347, %v346
  %v354 = vpack.c.bf16 %v349, %v348
  %v355 = vpack.c.bf16 %v351, %v350
  %v356 = vld [vmem:[%s3] sm:$0xf]
  %v357 = vld [vmem:[%s3 + $0x4] sm:$0xf]
  %v358 = vld [vmem:[%s3 + $0x8] sm:$0xf]
  %v359 = vld [vmem:[%s3 + $0xc] sm:$0xf]
  %v360 = vld [vmem:[%s3 + $0x10] sm:$0xf]
  %v361 = vld [vmem:[%s3 + $0x14] sm:$0xf]
  %v362 = vld [vmem:[%s3 + $0x18] sm:$0xf]
  %v363 = vld [vmem:[%s3 + $0x1c] sm:$0xf]
  %v364 = vld [vmem:[%s3 + $0x20] sm:$0xf]
  %v365 = vld [vmem:[%s3 + $0x24] sm:$0xf]
  %v366 = vld [vmem:[%s3 + $0x28] sm:$0xf]
  %v367 = vld [vmem:[%s3 + $0x2c] sm:$0xf]
  %v368 = vld [vmem:[%s3 + $0x30] sm:$0xf]
  %v369 = vld [vmem:[%s3 + $0x34] sm:$0xf]
  %v370 = vld [vmem:[%s3 + $0x38] sm:$0xf]
  %v371 = vld [vmem:[%s3 + $0x3c] sm:$0xf]
  %v372 = vld [vmem:[%s7 + $0x2] sm:$0x1]
  %v373 = vlaneseq
  %v374 = vshrl.u32 %v373, 7
  %v375 = vsub.s32 0, %v374
  %v376 = vrot.slane %v372, %v375
  %v393 = vunpack.c.l.b16 %v356
  %v394 = vunpack.c.l.b16 %v357
  %v395 = vunpack.c.l.b16 %v358
  %v396 = vunpack.c.l.b16 %v359
  %v397 = vunpack.c.l.b16 %v360
  %v398 = vunpack.c.l.b16 %v361
  %v399 = vunpack.c.l.b16 %v362
  %v400 = vunpack.c.l.b16 %v363
  %v401 = vunpack.c.l.b16 %v364
  %v402 = vunpack.c.l.b16 %v365
  %v403 = vunpack.c.l.b16 %v366
  %v404 = vunpack.c.l.b16 %v367
  %v405 = vunpack.c.l.b16 %v368
  %v406 = vunpack.c.l.b16 %v369
  %v407 = vunpack.c.l.b16 %v370
  %v408 = vunpack.c.l.b16 %v371
  %v409 = vpack.c.b16 %v394, %v393
  %v410 = vpack.c.b16 %v396, %v395
  %v411 = vpack.c.b16 %v398, %v397
  %v412 = vpack.c.b16 %v400, %v399
  %v413 = vpack.c.b16 %v402, %v401
  %v414 = vpack.c.b16 %v404, %v403
  %v415 = vpack.c.b16 %v406, %v405
  %v416 = vpack.c.b16 %v408, %v407
  %425 = vmatprep.subr.bf16.mxu0 0
  %426 = vmatpush1.bf16.msra.mxu0 %v409
  %427 = vmatprep.subr.bf16.mxu0 0
  %428 = vmatpush1.bf16.msra.mxu0 %v410
  %429 = vmatprep.subr.bf16.mxu0 0
  %430 = vmatpush1.bf16.msra.mxu0 %v411
  %431 = vmatprep.subr.bf16.mxu0 0
  %432 = vmatpush1.bf16.msra.mxu0 %v412
  %433 = vmatprep.subr.bf16.mxu0 0
  %434 = vmatpush1.bf16.msra.mxu0 %v413
  %435 = vmatprep.subr.bf16.mxu0 0
  %436 = vmatpush1.bf16.msra.mxu0 %v414
  %437 = vmatprep.subr.bf16.mxu0 0
  %438 = vmatpush1.bf16.msra.mxu0 %v415
  %439 = vmatprep.subr.bf16.mxu0 0
  %440 = vmatpush1.bf16.msra.mxu0 %v416
  %441 = vmatprep.subr.bf16.mxu0 0
  %442 = vmatpush1.bf16.msra.mxu0 0
  %443 = vmatprep.subr.bf16.mxu0 0
  %444 = vmatpush1.bf16.msra.mxu0 0
  %445 = vmatprep.subr.bf16.mxu0 0
  %446 = vmatpush1.bf16.msra.mxu0 0
  %447 = vmatprep.subr.bf16.mxu0 0
  %448 = vmatpush1.bf16.msra.mxu0 0
  %449 = vmatprep.subr.bf16.mxu0 0
  %450 = vmatpush1.bf16.msra.mxu0 0
  %451 = vmatprep.subr.bf16.mxu0 0
  %452 = vmatpush1.bf16.msra.mxu0 0
  %453 = vmatprep.subr.bf16.mxu0 0
  %454 = vmatpush1.bf16.msra.mxu0 0
  %455 = vmatprep.subr.bf16.mxu0 0
  %456 = vmatpush1.bf16.msra.mxu0 0
  %457 = vmatprep.mubr.bf16.mxu0 0
  %458 = vmatmul.mubr.bf16.gmra.mrb[0].mxu0 %v352
  %v459 = vpop.f32.mrb[0].mxu0
  %v460 = vadd.f32 %v376, %v459
  %v461 = vpop.f32.mrb[0].mxu0
  %v462 = vpop.f32.mrb[0].mxu0
  %v463 = vadd.f32 %v376, %v462
  %v464 = vpop.f32.mrb[0].mxu0
  %465 = vmatprep.mubr.bf16.mxu0 0
  %466 = vmatmul.mubr.bf16.gmra.mrb[0].mxu0 %v353
  %v467 = vpop.f32.mrb[0].mxu0
  %v468 = vadd.f32 %v376, %v467
  %v469 = vpop.f32.mrb[0].mxu0
  %v470 = vpop.f32.mrb[0].mxu0
  %v471 = vadd.f32 %v376, %v470
  %v472 = vpop.f32.mrb[0].mxu0
  %473 = vmatprep.mubr.bf16.mxu0 0
  %474 = vmatmul.mubr.bf16.gmra.mrb[0].mxu0 %v354
  %v475 = vpop.f32.mrb[0].mxu0
  %v476 = vadd.f32 %v376, %v475
  %v477 = vpop.f32.mrb[0].mxu0
  %v478 = vpop.f32.mrb[0].mxu0
  %v479 = vadd.f32 %v376, %v478
  %v480 = vpop.f32.mrb[0].mxu0
  %481 = vmatprep.mubr.bf16.mxu0 0
  %482 = vmatmul.mubr.bf16.gmra.mrb[0].mxu0 %v355
  %v483 = vpop.f32.mrb[0].mxu0
  %v484 = vadd.f32 %v376, %v483
  %v485 = vpop.f32.mrb[0].mxu0
  %v486 = vpop.f32.mrb[0].mxu0
  %v487 = vadd.f32 %v376, %v486
  %v488 = vpop.f32.mrb[0].mxu0
  %489 = vdwg.mxu0
  %490 = vst [vmem:[%s8] sm:$0xff] %v460
  %491 = vst [vmem:[%s8 + $0x8] sm:$0xff] %v463
  %492 = vst [vmem:[%s8 + $0x10] sm:$0xff] %v468
  %493 = vst [vmem:[%s8 + $0x18] sm:$0xff] %v471
  %494 = vst [vmem:[%s8 + $0x20] sm:$0xff] %v476
  %495 = vst [vmem:[%s8 + $0x28] sm:$0xff] %v479
  %496 = vst [vmem:[%s8 + $0x30] sm:$0xff] %v484
  %497 = vst [vmem:[%s8 + $0x38] sm:$0xff] %v487
  %v498 = vpack.c.bf16 %v463, %v460
  %v499 = vpack.c.bf16 %v471, %v468
  %v500 = vpack.c.bf16 %v479, %v476
  %v501 = vpack.c.bf16 %v487, %v484
  %v502 = vld [vmem:[%s4] sm:$0xf]
  %v503 = vld [vmem:[%s4 + $0x4] sm:$0xf]
  %v504 = vld [vmem:[%s4 + $0x8] sm:$0xf]
  %v505 = vld [vmem:[%s4 + $0xc] sm:$0xf]
  %v506 = vld [vmem:[%s4 + $0x10] sm:$0xf]
  %v507 = vld [vmem:[%s4 + $0x14] sm:$0xf]
  %v508 = vld [vmem:[%s4 + $0x18] sm:$0xf]
  %v509 = vld [vmem:[%s4 + $0x1c] sm:$0xf]
  %v510 = vld [vmem:[%s4 + $0x20] sm:$0xf]
  %v511 = vld [vmem:[%s4 + $0x24] sm:$0xf]
  %v512 = vld [vmem:[%s4 + $0x28] sm:$0xf]
  %v513 = vld [vmem:[%s4 + $0x2c] sm:$0xf]
  %v514 = vld [vmem:[%s4 + $0x30] sm:$0xf]
  %v515 = vld [vmem:[%s4 + $0x34] sm:$0xf]
  %v516 = vld [vmem:[%s4 + $0x38] sm:$0xf]
  %v517 = vld [vmem:[%s4 + $0x3c] sm:$0xf]
  %v518 = vld [vmem:[%s7 + $0x3] sm:$0x1]
  %v519 = vlaneseq
  %v520 = vshrl.u32 %v519, 7
  %v521 = vsub.s32 0, %v520
  %v522 = vrot.slane %v518, %v521
  %v539 = vunpack.c.l.b16 %v502
  %v540 = vunpack.c.l.b16 %v503
  %v541 = vunpack.c.l.b16 %v504
  %v542 = vunpack.c.l.b16 %v505
  %v543 = vunpack.c.l.b16 %v506
  %v544 = vunpack.c.l.b16 %v507
  %v545 = vunpack.c.l.b16 %v508
  %v546 = vunpack.c.l.b16 %v509
  %v547 = vunpack.c.l.b16 %v510
  %v548 = vunpack.c.l.b16 %v511
  %v549 = vunpack.c.l.b16 %v512
  %v550 = vunpack.c.l.b16 %v513
  %v551 = vunpack.c.l.b16 %v514
  %v552 = vunpack.c.l.b16 %v515
  %v553 = vunpack.c.l.b16 %v516
  %v554 = vunpack.c.l.b16 %v517
  %v555 = vpack.c.b16 %v540, %v539
  %v556 = vpack.c.b16 %v542, %v541
  %v557 = vpack.c.b16 %v544, %v543
  %v558 = vpack.c.b16 %v546, %v545
  %v559 = vpack.c.b16 %v548, %v547
  %v560 = vpack.c.b16 %v550, %v549
  %v561 = vpack.c.b16 %v552, %v551
  %v562 = vpack.c.b16 %v554, %v553
  %571 = vmatprep.subr.bf16.mxu0 0
  %572 = vmatpush1.bf16.msra.mxu0 %v555
  %573 = vmatprep.subr.bf16.mxu0 0
  %574 = vmatpush1.bf16.msra.mxu0 %v556
  %575 = vmatprep.subr.bf16.mxu0 0
  %576 = vmatpush1.bf16.msra.mxu0 %v557
  %577 = vmatprep.subr.bf16.mxu0 0
  %578 = vmatpush1.bf16.msra.mxu0 %v558
  %579 = vmatprep.subr.bf16.mxu0 0
  %580 = vmatpush1.bf16.msra.mxu0 %v559
  %581 = vmatprep.subr.bf16.mxu0 0
  %582 = vmatpush1.bf16.msra.mxu0 %v560
  %583 = vmatprep.subr.bf16.mxu0 0
  %584 = vmatpush1.bf16.msra.mxu0 %v561
  %585 = vmatprep.subr.bf16.mxu0 0
  %586 = vmatpush1.bf16.msra.mxu0 %v562
  %587 = vmatprep.subr.bf16.mxu0 0
  %588 = vmatpush1.bf16.msra.mxu0 0
  %589 = vmatprep.subr.bf16.mxu0 0
  %590 = vmatpush1.bf16.msra.mxu0 0
  %591 = vmatprep.subr.bf16.mxu0 0
  %592 = vmatpush1.bf16.msra.mxu0 0
  %593 = vmatprep.subr.bf16.mxu0 0
  %594 = vmatpush1.bf16.msra.mxu0 0
  %595 = vmatprep.subr.bf16.mxu0 0
  %596 = vmatpush1.bf16.msra.mxu0 0
  %597 = vmatprep.subr.bf16.mxu0 0
  %598 = vmatpush1.bf16.msra.mxu0 0
  %599 = vmatprep.subr.bf16.mxu0 0
  %600 = vmatpush1.bf16.msra.mxu0 0
  %601 = vmatprep.subr.bf16.mxu0 0
  %602 = vmatpush1.bf16.msra.mxu0 0
  %603 = vmatprep.mubr.bf16.mxu0 0
  %604 = vmatmul.mubr.bf16.gmra.mrb[0].mxu0 %v498
  %v605 = vpop.f32.mrb[0].mxu0
  %v606 = vadd.f32 %v522, %v605
  %v607 = vpop.f32.mrb[0].mxu0
  %v608 = vpop.f32.mrb[0].mxu0
  %v609 = vadd.f32 %v522, %v608
  %v610 = vpop.f32.mrb[0].mxu0
  %611 = vmatprep.mubr.bf16.mxu0 0
  %612 = vmatmul.mubr.bf16.gmra.mrb[0].mxu0 %v499
  %v613 = vpop.f32.mrb[0].mxu0
  %v614 = vadd.f32 %v522, %v613
  %v615 = vpop.f32.mrb[0].mxu0
  %v616 = vpop.f32.mrb[0].mxu0
  %v617 = vadd.f32 %v522, %v616
  %v618 = vpop.f32.mrb[0].mxu0
  %619 = vmatprep.mubr.bf16.mxu0 0
  %620 = vmatmul.mubr.bf16.gmra.mrb[0].mxu0 %v500
  %v621 = vpop.f32.mrb[0].mxu0
  %v622 = vadd.f32 %v522, %v621
  %v623 = vpop.f32.mrb[0].mxu0
  %v624 = vpop.f32.mrb[0].mxu0
  %v625 = vadd.f32 %v522, %v624
  %v626 = vpop.f32.mrb[0].mxu0
  %627 = vmatprep.mubr.bf16.mxu0 0
  %628 = vmatmul.mubr.bf16.gmra.mrb[0].mxu0 %v501
  %v629 = vpop.f32.mrb[0].mxu0
  %v630 = vadd.f32 %v522, %v629
  %v631 = vpop.f32.mrb[0].mxu0
  %v632 = vpop.f32.mrb[0].mxu0
  %v633 = vadd.f32 %v522, %v632
  %v634 = vpop.f32.mrb[0].mxu0
  %635 = vdwg.mxu0
  %v636 = vmax.f32 %v606, 0.0
  %v637 = vmax.f32 %v609, 0.0
  %v638 = vmax.f32 %v614, 0.0
  %v639 = vmax.f32 %v617, 0.0
  %v640 = vmax.f32 %v622, 0.0
  %v641 = vmax.f32 %v625, 0.0
  %v642 = vmax.f32 %v630, 0.0
  %v643 = vmax.f32 %v633, 0.0
  %v644 = vpack.c.bf16 %v637, %v636
  %v645 = vpack.c.bf16 %v639, %v638
  %v646 = vpack.c.bf16 %v641, %v640
  %v647 = vpack.c.bf16 %v643, %v642
  %v648 = vld [vmem:[%s5] sm:$0xf]
  %v649 = vld [vmem:[%s5 + $0x4] sm:$0xf]
  %v650 = vld [vmem:[%s5 + $0x8] sm:$0xf]
  %v651 = vld [vmem:[%s5 + $0xc] sm:$0xf]
  %v652 = vld [vmem:[%s5 + $0x10] sm:$0xf]
  %v653 = vld [vmem:[%s5 + $0x14] sm:$0xf]
  %v654 = vld [vmem:[%s5 + $0x18] sm:$0xf]
  %v655 = vld [vmem:[%s5 + $0x1c] sm:$0xf]
  %v656 = vld [vmem:[%s5 + $0x20] sm:$0xf]
  %v657 = vld [vmem:[%s5 + $0x24] sm:$0xf]
  %v658 = vld [vmem:[%s5 + $0x28] sm:$0xf]
  %v659 = vld [vmem:[%s5 + $0x2c] sm:$0xf]
  %v660 = vld [vmem:[%s5 + $0x30] sm:$0xf]
  %v661 = vld [vmem:[%s5 + $0x34] sm:$0xf]
  %v662 = vld [vmem:[%s5 + $0x38] sm:$0xf]
  %v663 = vld [vmem:[%s5 + $0x3c] sm:$0xf]
  %v664 = vld [vmem:[%s7 + $0x4] sm:$0x1]
  %v665 = vlaneseq
  %v666 = vshrl.u32 %v665, 7
  %v667 = vsub.s32 0, %v666
  %v668 = vrot.slane %v664, %v667
  %v685 = vunpack.c.l.b16 %v648
  %v686 = vunpack.c.l.b16 %v649
  %v687 = vunpack.c.l.b16 %v650
  %v688 = vunpack.c.l.b16 %v651
  %v689 = vunpack.c.l.b16 %v652
  %v690 = vunpack.c.l.b16 %v653
  %v691 = vunpack.c.l.b16 %v654
  %v692 = vunpack.c.l.b16 %v655
  %v693 = vunpack.c.l.b16 %v656
  %v694 = vunpack.c.l.b16 %v657
  %v695 = vunpack.c.l.b16 %v658
  %v696 = vunpack.c.l.b16 %v659
  %v697 = vunpack.c.l.b16 %v660
  %v698 = vunpack.c.l.b16 %v661
  %v699 = vunpack.c.l.b16 %v662
  %v700 = vunpack.c.l.b16 %v663
  %v701 = vpack.c.b16 %v686, %v685
  %v702 = vpack.c.b16 %v688, %v687
  %v703 = vpack.c.b16 %v690, %v689
  %v704 = vpack.c.b16 %v692, %v691
  %v705 = vpack.c.b16 %v694, %v693
  %v706 = vpack.c.b16 %v696, %v695
  %v707 = vpack.c.b16 %v698, %v697
  %v708 = vpack.c.b16 %v700, %v699
  %717 = vmatprep.subr.bf16.mxu0 0
  %718 = vmatpush1.bf16.msra.mxu0 %v701
  %719 = vmatprep.subr.bf16.mxu0 0
  %720 = vmatpush1.bf16.msra.mxu0 %v702
  %721 = vmatprep.subr.bf16.mxu0 0
  %722 = vmatpush1.bf16.msra.mxu0 %v703
  %723 = vmatprep.subr.bf16.mxu0 0
  %724 = vmatpush1.bf16.msra.mxu0 %v704
  %725 = vmatprep.subr.bf16.mxu0 0
  %726 = vmatpush1.bf16.msra.mxu0 %v705
  %727 = vmatprep.subr.bf16.mxu0 0
  %728 = vmatpush1.bf16.msra.mxu0 %v706
  %729 = vmatprep.subr.bf16.mxu0 0
  %730 = vmatpush1.bf16.msra.mxu0 %v707
  %731 = vmatprep.subr.bf16.mxu0 0
  %732 = vmatpush1.bf16.msra.mxu0 %v708
  %733 = vmatprep.subr.bf16.mxu0 0
  %734 = vmatpush1.bf16.msra.mxu0 0
  %735 = vmatprep.subr.bf16.mxu0 0
  %736 = vmatpush1.bf16.msra.mxu0 0
  %737 = vmatprep.subr.bf16.mxu0 0
  %738 = vmatpush1.bf16.msra.mxu0 0
  %739 = vmatprep.subr.bf16.mxu0 0
  %740 = vmatpush1.bf16.msra.mxu0 0
  %741 = vmatprep.subr.bf16.mxu0 0
  %742 = vmatpush1.bf16.msra.mxu0 0
  %743 = vmatprep.subr.bf16.mxu0 0
  %744 = vmatpush1.bf16.msra.mxu0 0
  %745 = vmatprep.subr.bf16.mxu0 0
  %746 = vmatpush1.bf16.msra.mxu0 0
  %747 = vmatprep.subr.bf16.mxu0 0
  %748 = vmatpush1.bf16.msra.mxu0 0
  %749 = vmatprep.mubr.bf16.mxu0 0
  %750 = vmatmul.mubr.bf16.gmra.mrb[0].mxu0 %v644
  %v751 = vpop.f32.mrb[0].mxu0
  %v752 = vadd.f32 %v668, %v751
  %v753 = vpop.f32.mrb[0].mxu0
  %v754 = vpop.f32.mrb[0].mxu0
  %v755 = vadd.f32 %v668, %v754
  %v756 = vpop.f32.mrb[0].mxu0
  %757 = vmatprep.mubr.bf16.mxu0 0
  %758 = vmatmul.mubr.bf16.gmra.mrb[0].mxu0 %v645
  %v759 = vpop.f32.mrb[0].mxu0
  %v760 = vadd.f32 %v668, %v759
  %v761 = vpop.f32.mrb[0].mxu0
  %v762 = vpop.f32.mrb[0].mxu0
  %v763 = vadd.f32 %v668, %v762
  %v764 = vpop.f32.mrb[0].mxu0
  %765 = vmatprep.mubr.bf16.mxu0 0
  %766 = vmatmul.mubr.bf16.gmra.mrb[0].mxu0 %v646
  %v767 = vpop.f32.mrb[0].mxu0
  %v768 = vadd.f32 %v668, %v767
  %v769 = vpop.f32.mrb[0].mxu0
  %v770 = vpop.f32.mrb[0].mxu0
  %v771 = vadd.f32 %v668, %v770
  %v772 = vpop.f32.mrb[0].mxu0
  %773 = vmatprep.mubr.bf16.mxu0 0
  %774 = vmatmul.mubr.bf16.gmra.mrb[0].mxu0 %v647
  %v775 = vpop.f32.mrb[0].mxu0
  %v776 = vadd.f32 %v668, %v775
  %v777 = vpop.f32.mrb[0].mxu0
  %v778 = vpop.f32.mrb[0].mxu0
  %v779 = vadd.f32 %v668, %v778
  %v780 = vpop.f32.mrb[0].mxu0
  %781 = vdwg.mxu0
  %v782 = vmax.f32 %v752, 0.0
  %v783 = vmax.f32 %v755, 0.0
  %v784 = vmax.f32 %v760, 0.0
  %v785 = vmax.f32 %v763, 0.0
  %v786 = vmax.f32 %v768, 0.0
  %v787 = vmax.f32 %v771, 0.0
  %v788 = vmax.f32 %v776, 0.0
  %v789 = vmax.f32 %v779, 0.0
  %v790 = vpack.c.bf16 %v783, %v782
  %v791 = vpack.c.bf16 %v785, %v784
  %v792 = vpack.c.bf16 %v787, %v786
  %v793 = vpack.c.bf16 %v789, %v788
  %v794 = vld [vmem:[%s6] sm:$0xf]
  %v795 = vld [vmem:[%s6 + $0x4] sm:$0xf]
  %v796 = vld [vmem:[%s6 + $0x8] sm:$0xf]
  %v797 = vld [vmem:[%s6 + $0xc] sm:$0xf]
  %v798 = vld [vmem:[%s6 + $0x10] sm:$0xf]
  %v799 = vld [vmem:[%s6 + $0x14] sm:$0xf]
  %v800 = vld [vmem:[%s6 + $0x18] sm:$0xf]
  %v801 = vld [vmem:[%s6 + $0x1c] sm:$0xf]
  %v802 = vld [vmem:[%s6 + $0x20] sm:$0xf]
  %v803 = vld [vmem:[%s6 + $0x24] sm:$0xf]
  %v804 = vld [vmem:[%s6 + $0x28] sm:$0xf]
  %v805 = vld [vmem:[%s6 + $0x2c] sm:$0xf]
  %v806 = vld [vmem:[%s6 + $0x30] sm:$0xf]
  %v807 = vld [vmem:[%s6 + $0x34] sm:$0xf]
  %v808 = vld [vmem:[%s6 + $0x38] sm:$0xf]
  %v809 = vld [vmem:[%s6 + $0x3c] sm:$0xf]
  %v810 = vld [vmem:[%s7 + $0x5] sm:$0x1]
  %v811 = vlaneseq
  %v812 = vshrl.u32 %v811, 7
  %v813 = vsub.s32 0, %v812
  %v814 = vrot.slane %v810, %v813
  %v831 = vunpack.c.l.b16 %v794
  %v832 = vunpack.c.l.b16 %v795
  %v833 = vunpack.c.l.b16 %v796
  %v834 = vunpack.c.l.b16 %v797
  %v835 = vunpack.c.l.b16 %v798
  %v836 = vunpack.c.l.b16 %v799
  %v837 = vunpack.c.l.b16 %v800
  %v838 = vunpack.c.l.b16 %v801
  %v839 = vunpack.c.l.b16 %v802
  %v840 = vunpack.c.l.b16 %v803
  %v841 = vunpack.c.l.b16 %v804
  %v842 = vunpack.c.l.b16 %v805
  %v843 = vunpack.c.l.b16 %v806
  %v844 = vunpack.c.l.b16 %v807
  %v845 = vunpack.c.l.b16 %v808
  %v846 = vunpack.c.l.b16 %v809
  %v847 = vpack.c.b16 %v832, %v831
  %v848 = vpack.c.b16 %v834, %v833
  %v849 = vpack.c.b16 %v836, %v835
  %v850 = vpack.c.b16 %v838, %v837
  %v851 = vpack.c.b16 %v840, %v839
  %v852 = vpack.c.b16 %v842, %v841
  %v853 = vpack.c.b16 %v844, %v843
  %v854 = vpack.c.b16 %v846, %v845
  %863 = vmatprep.subr.bf16.mxu0 0
  %864 = vmatpush1.bf16.msra.mxu0 %v847
  %865 = vmatprep.subr.bf16.mxu0 0
  %866 = vmatpush1.bf16.msra.mxu0 %v848
  %867 = vmatprep.subr.bf16.mxu0 0
  %868 = vmatpush1.bf16.msra.mxu0 %v849
  %869 = vmatprep.subr.bf16.mxu0 0
  %870 = vmatpush1.bf16.msra.mxu0 %v850
  %871 = vmatprep.subr.bf16.mxu0 0
  %872 = vmatpush1.bf16.msra.mxu0 %v851
  %873 = vmatprep.subr.bf16.mxu0 0
  %874 = vmatpush1.bf16.msra.mxu0 %v852
  %875 = vmatprep.subr.bf16.mxu0 0
  %876 = vmatpush1.bf16.msra.mxu0 %v853
  %877 = vmatprep.subr.bf16.mxu0 0
  %878 = vmatpush1.bf16.msra.mxu0 %v854
  %879 = vmatprep.subr.bf16.mxu0 0
  %880 = vmatpush1.bf16.msra.mxu0 0
  %881 = vmatprep.subr.bf16.mxu0 0
  %882 = vmatpush1.bf16.msra.mxu0 0
  %883 = vmatprep.subr.bf16.mxu0 0
  %884 = vmatpush1.bf16.msra.mxu0 0
  %885 = vmatprep.subr.bf16.mxu0 0
  %886 = vmatpush1.bf16.msra.mxu0 0
  %887 = vmatprep.subr.bf16.mxu0 0
  %888 = vmatpush1.bf16.msra.mxu0 0
  %889 = vmatprep.subr.bf16.mxu0 0
  %890 = vmatpush1.bf16.msra.mxu0 0
  %891 = vmatprep.subr.bf16.mxu0 0
  %892 = vmatpush1.bf16.msra.mxu0 0
  %893 = vmatprep.subr.bf16.mxu0 0
  %894 = vmatpush1.bf16.msra.mxu0 0
  %895 = vmatprep.mubr.bf16.mxu0 0
  %896 = vmatmul.mubr.bf16.gmra.mrb[0].mxu0 %v790
  %v897 = vpop.f32.mrb[0].mxu0
  %v898 = vadd.f32 %v814, %v897
  %v899 = vpop.f32.mrb[0].mxu0
  %v900 = vpop.f32.mrb[0].mxu0
  %v901 = vadd.f32 %v814, %v900
  %v902 = vpop.f32.mrb[0].mxu0
  %903 = vmatprep.mubr.bf16.mxu0 0
  %904 = vmatmul.mubr.bf16.gmra.mrb[0].mxu0 %v791
  %v905 = vpop.f32.mrb[0].mxu0
  %v906 = vadd.f32 %v814, %v905
  %v907 = vpop.f32.mrb[0].mxu0
  %v908 = vpop.f32.mrb[0].mxu0
  %v909 = vadd.f32 %v814, %v908
  %v910 = vpop.f32.mrb[0].mxu0
  %911 = vmatprep.mubr.bf16.mxu0 0
  %912 = vmatmul.mubr.bf16.gmra.mrb[0].mxu0 %v792
  %v913 = vpop.f32.mrb[0].mxu0
  %v914 = vadd.f32 %v814, %v913
  %v915 = vpop.f32.mrb[0].mxu0
  %v916 = vpop.f32.mrb[0].mxu0
  %v917 = vadd.f32 %v814, %v916
  %v918 = vpop.f32.mrb[0].mxu0
  %919 = vmatprep.mubr.bf16.mxu0 0
  %920 = vmatmul.mubr.bf16.gmra.mrb[0].mxu0 %v793
  %v921 = vpop.f32.mrb[0].mxu0
  %v922 = vadd.f32 %v814, %v921
  %v923 = vpop.f32.mrb[0].mxu0
  %v924 = vpop.f32.mrb[0].mxu0
  %v925 = vadd.f32 %v814, %v924
  %v926 = vpop.f32.mrb[0].mxu0
  %927 = vdwg.mxu0
  %928 = vst [vmem:[%s9] sm:$0xff] %v898
  %929 = vst [vmem:[%s9 + $0x8] sm:$0xff] %v901
  %930 = vst [vmem:[%s9 + $0x10] sm:$0xff] %v906
  %931 = vst [vmem:[%s9 + $0x18] sm:$0xff] %v909
  %932 = vst [vmem:[%s9 + $0x20] sm:$0xff] %v914
  %933 = vst [vmem:[%s9 + $0x28] sm:$0xff] %v917
  %934 = vst [vmem:[%s9 + $0x30] sm:$0xff] %v922
  %935 = vst [vmem:[%s9 + $0x38] sm:$0xff] %v925
  // Predicated region
  $region34: #{autoencoder_forward.1} parent=0 // pred_check
    _
  $region35: #{autoencoder_forward.1} parent=0 // pred_check_branch
    %937 = sbr.rel (0) target = $region37
  $region36: #{autoencoder_forward.1} parent=0 // pred_region
    _
  $region37: #{autoencoder_forward.1} parent=0 // pred_fallthru
    _
  // Predicated region
  $region38: #{autoencoder_forward.1} parent=0 // pred_check
    _
  $region39: #{autoencoder_forward.1} parent=0 // pred_check_branch
    %939 = sbr.rel (0) target = $region41
  $region40: #{autoencoder_forward.1} parent=0 // pred_region
    _
  $region41: #{autoencoder_forward.1} parent=0 // pred_fallthru
    _
  // Predicated region
  $region42: #{autoencoder_forward.1} parent=0 // pred_check
    _
  $region43: #{autoencoder_forward.1} parent=0 // pred_check_branch
    %941 = sbr.rel (0) target = $region45
  $region44: #{autoencoder_forward.1} parent=0 // pred_region
    _
  $region45: #{autoencoder_forward.1} parent=0 // pred_fallthru
    _
  // Predicated region
  $region46: #{autoencoder_forward.1} parent=0 // pred_check
    _
  $region47: #{autoencoder_forward.1} parent=0 // pred_check_branch
    %943 = sbr.rel (0) target = $region49
  $region48: #{autoencoder_forward.1} parent=0 // pred_region
    _
  $region49: #{autoencoder_forward.1} parent=0 // pred_fallthru
    _

</llo_original>
